<compile_context>
chip_gen: v7x
topology: tpu7x:2x2x1
jax: 0.10.0
libtpu: 0.0.40
codegen_flags: <defaults>
</compile_context>

<pallas_src>
import functools

import jax
import jax.numpy as jnp
from jax.experimental import pallas as pl
from jax.experimental.pallas import tpu as pltpu


def _pairwise_kernel(x_ref, wl_ref, bl_ref, wc_ref, bc_ref, out_ref,
                     *, negative_slope, bt, sz, d):
    # x_ref : (bt, sz, d)   embeddings tile (f32 or bf16)
    # wl_ref: (d, d)        W_left^T (same dtype as x)
    # bl_ref: (1, d)        b_left (f32)
    # wc_ref: (d, 2)        classifier weights: col 0 = wc[:d], col 1 = wc[d:]
    # bc_ref: (1,) SMEM     classifier bias scalar
    # out_ref: (bt, sz, sz) logits block (f32); j on the lane axis
    x = x_ref[...].reshape(bt * sz, d)

    # Shared-weight projection; accumulate in f32 regardless of input dtype.
    h = jnp.dot(x, wl_ref[...], preferred_element_type=jnp.float32) + bl_ref[...]

    # LeakyReLU(0.2).  (Dropout is the identity at inference time.)
    act = jnp.where(h >= 0, h, negative_slope * h)

    # Per-row classifier contributions:
    #   la[:, 0] = act · wc[:d]   ("left"  term, indexed by j)
    #   la[:, 1] = act · wc[d:]   ("right" term, indexed by i)
    la = jnp.dot(act, wc_ref[...], preferred_element_type=jnp.float32)  # (bt*sz, 2)

    bias = bc_ref[0]
    for b in range(bt):                            # static unroll over batch tile
        la_b = la[b * sz:(b + 1) * sz, :]          # (sz, 2)
        left_row = la_b.T[0:1, :]                  # (1, sz)  j on lanes
        right_col = la_b[:, 1:2]                   # (sz, 1)  i on sublanes
        out_ref[b] = right_col + (left_row + bias)  # (sz, sz) broadcast-add


def pairwise_prediction(embeddings, w_left, b_left, w_cls, b_cls,
                        *, negative_slope=0.2, block_batch=None,
                        matmul_dtype=jnp.float32):
    """Pallas implementation of PairwisePrediction.forward (eval mode).

    embeddings: (bz, sz, d) f32
    w_left:     (d, d)      PyTorch Linear convention (out_features, in_features)
    b_left:     (d,)
    w_cls:      (1, 2d)
    b_cls:      (1,)
    returns:    (bz, sz, sz, 1) f32
    """
    bz, sz, d = embeddings.shape

    # Fuse enough batch elements per grid step that the projection matmul sees
    # >= ~256 rows (fills the MXU M dim and amortizes per-step overhead).
    if block_batch is None:
        block_batch = max(1, min(bz, pl.cdiv(256, sz)))
    bt = int(block_batch)

    x = jnp.asarray(embeddings, jnp.float32)
    bz_pad = pl.cdiv(bz, bt) * bt
    if bz_pad != bz:
        x = jnp.pad(x, ((0, bz_pad - bz), (0, 0), (0, 0)))

    # Parameters in the layouts the kernel expects.
    wl_t = jnp.asarray(w_left, jnp.float32).T              # (d, d): x @ wl_t == x @ W^T
    bl2 = jnp.asarray(b_left, jnp.float32).reshape(1, d)   # (1, d)
    wc2 = jnp.asarray(w_cls, jnp.float32).reshape(2, d).T  # (d, 2): col0=left, col1=right
    bc1 = jnp.asarray(b_cls, jnp.float32).reshape(1)       # (1,) SMEM scalar

    # Optional bf16 inputs to the projection matmul (v6e/v7x MXU); accumulation
    # stays f32 via preferred_element_type inside the kernel.
    mm_dtype = jnp.dtype(matmul_dtype)
    x = x.astype(mm_dtype)
    wl_t = wl_t.astype(mm_dtype)

    kernel = functools.partial(_pairwise_kernel,
                               negative_slope=negative_slope,
                               bt=bt, sz=sz, d=d)

    out = pl.pallas_call(
        kernel,
        out_shape=jax.ShapeDtypeStruct((bz_pad, sz, sz), jnp.float32),
        grid_spec=pltpu.PrefetchScalarGridSpec(
            num_scalar_prefetch=0,
            grid=(bz_pad // bt,),
            in_specs=[
                pl.BlockSpec((bt, sz, d), lambda b: (b, 0, 0)),       # embeddings tile
                pl.BlockSpec((d, d), lambda b: (0, 0)),               # W_left^T
                pl.BlockSpec((1, d), lambda b: (0, 0)),               # b_left
                pl.BlockSpec((d, 2), lambda b: (0, 0)),               # W_cls reshaped (d, 2)
                pl.BlockSpec(memory_space=pltpu.MemorySpace.SMEM),    # b_cls scalar
            ],
            out_specs=pl.BlockSpec((bt, sz, sz), lambda b: (b, 0, 0)),
        ),
        compiler_params=pltpu.CompilerParams(
            dimension_semantics=("parallel",)),
    )(x, wl_t, bl2, wc2, bc1)

    return out[:bz].reshape(bz, sz, sz, 1)


def _reference(embeddings, w_left, b_left, w_cls, b_cls, negative_slope=0.2):
    """Pure-JAX mirror of the PyTorch forward (share_weights=True, eval mode)."""
    bz, sz, d = embeddings.shape
    h = embeddings @ w_left.T + b_left                    # linear_left == linear_right
    left = jnp.tile(h, (1, sz, 1))                        # .repeat(1, sz, 1)
    right = jnp.repeat(h, sz, axis=1)                     # .repeat_interleave(sz, dim=1)
    pair = jnp.concatenate([left, right], axis=-1).reshape(bz, sz, sz, -1)
    act = jnp.where(pair >= 0, pair, negative_slope * pair)
    return act @ w_cls.T + b_cls                          # (bz, sz, sz, 1)


if __name__ == "__main__":
    # Small shapes: batch=2, seq=8, d_model=32.
    bz, sz, d_model = 2, 8, 32

    key = jax.random.PRNGKey(0)
    k_x, k_wl, k_bl, k_wc, k_bc = jax.random.split(key, 5)

    embeddings = jax.random.normal(k_x, (bz, sz, d_model), jnp.float32)

    # Deterministic parameter init mimicking PyTorch Linear default
    # (uniform in +-1/sqrt(fan_in)).
    lim_l = 1.0 / jnp.sqrt(jnp.float32(d_model))
    lim_c = 1.0 / jnp.sqrt(jnp.float32(2 * d_model))
    w_left = jax.random.uniform(k_wl, (d_model, d_model), jnp.float32, -lim_l, lim_l)
    b_left = jax.random.uniform(k_bl, (d_model,), jnp.float32, -lim_l, lim_l)
    w_cls = jax.random.uniform(k_wc, (1, 2 * d_model), jnp.float32, -lim_c, lim_c)
    b_cls = jax.random.uniform(k_bc, (1,), jnp.float32, -lim_c, lim_c)

    ref = _reference(embeddings, w_left, b_left, w_cls, b_cls)

    # f32 path (default tiling: both batches fused in one grid step).
    out = pairwise_prediction(embeddings, w_left, b_left, w_cls, b_cls)
    out = jax.block_until_ready(out)
    assert out.shape == (bz, sz, sz, 1), out.shape
    assert jnp.allclose(out, ref, atol=1e-5, rtol=1e-5), \
        float(jnp.max(jnp.abs(out - ref)))

    # Multi-step grid (one batch per step) -- exercises the parallel grid axis.
    out_g = pairwise_prediction(embeddings, w_left, b_left, w_cls, b_cls,
                                block_batch=1)
    out_g = jax.block_until_ready(out_g)
    assert jnp.allclose(out_g, ref, atol=1e-5, rtol=1e-5), \
        float(jnp.max(jnp.abs(out_g - ref)))

    # bf16 projection-matmul path (v6e/v7x MXU) -- f32 accumulate, looser tol.
    out_bf16 = pairwise_prediction(embeddings, w_left, b_left, w_cls, b_cls,
                                   matmul_dtype=jnp.bfloat16)
    out_bf16 = jax.block_until_ready(out_bf16)
    assert jnp.allclose(out_bf16, ref, atol=5e-2, rtol=5e-2), \
        float(jnp.max(jnp.abs(out_bf16 - ref)))

    print("KERNEL_OK")
</pallas_src>

<mosaic_0001>
module attributes {stable_mosaic.version = 11 : i64} {
  func.func @_pairwise_kernel(%arg0: i32, %arg1: memref<2x8x32xf32, #tpu.memory_space<vmem>>, %arg2: memref<32x32xf32, #tpu.memory_space<vmem>>, %arg3: memref<1x32xf32, #tpu.memory_space<vmem>>, %arg4: memref<32x2xf32, #tpu.memory_space<vmem>>, %arg5: memref<1xf32, #tpu.memory_space<smem>>, %arg6: memref<2x8x8xf32, #tpu.memory_space<vmem>>) attributes {dimension_semantics = [#tpu.dimension_semantics<parallel>], iteration_bounds = array<i64: 1>, scalar_prefetch = 0 : i64, scratch_operands = 0 : i64, tpu.core_type = #tpu.core_type<tc>, window_params = [{transform_indices = @transform_0, window_bounds = array<i64: 2, 8, 32>}, {pipeline_mode = #tpu.pipeline_mode<synchronous>, transform_indices = @transform_1, window_bounds = array<i64: 32, 32>}, {pipeline_mode = #tpu.pipeline_mode<synchronous>, transform_indices = @transform_2, window_bounds = array<i64: 1, 32>}, {pipeline_mode = #tpu.pipeline_mode<synchronous>, transform_indices = @transform_3, window_bounds = array<i64: 32, 2>}, {transform_indices = @transform_4, window_bounds = array<i64: 1>}, {transform_indices = @transform_5, window_bounds = array<i64: 2, 8, 8>}]} {
    %c0 = arith.constant 0 : index
    %c0_0 = arith.constant 0 : index
    %c0_1 = arith.constant 0 : index
    %0 = vector.load %arg1[%c0, %c0_0, %c0_1] : memref<2x8x32xf32, #tpu.memory_space<vmem>>, vector<2x8x32xf32>
    %1 = vector.shape_cast %0 : vector<2x8x32xf32> to vector<16x32xf32>
    %c0_2 = arith.constant 0 : index
    %c0_3 = arith.constant 0 : index
    %2 = vector.load %arg2[%c0_2, %c0_3] : memref<32x32xf32, #tpu.memory_space<vmem>>, vector<32x32xf32>
    %cst = arith.constant dense<0.000000e+00> : vector<16x32xf32>
    %3 = tpu.matmul %1, %2, %cst {dimension_numbers = #tpu.dot_dimension_numbers<[1], [0], [0], [1], [0, 0, 1, 1], [], []>} : vector<16x32xf32>, vector<32x32xf32>, vector<16x32xf32> -> vector<16x32xf32>
    %c0_4 = arith.constant 0 : index
    %c0_5 = arith.constant 0 : index
    %4 = vector.load %arg3[%c0_4, %c0_5] : memref<1x32xf32, #tpu.memory_space<vmem>>, vector<1x32xf32>
    %5 = vector.broadcast %4 : vector<1x32xf32> to vector<16x32xf32>
    %6 = arith.addf %3, %5 : vector<16x32xf32>
    %cst_6 = arith.constant 0.000000e+00 : f32
    %7 = vector.broadcast %cst_6 : f32 to vector<16x32xf32>
    %8 = arith.cmpf oge, %6, %7 : vector<16x32xf32>
    %cst_7 = arith.constant 2.000000e-01 : f32
    %9 = vector.broadcast %cst_7 : f32 to vector<16x32xf32>
    %10 = arith.mulf %9, %6 : vector<16x32xf32>
    %11 = arith.select %8, %6, %10 : vector<16x32xi1>, vector<16x32xf32>
    %c0_8 = arith.constant 0 : index
    %c0_9 = arith.constant 0 : index
    %12 = vector.load %arg4[%c0_8, %c0_9] : memref<32x2xf32, #tpu.memory_space<vmem>>, vector<32x2xf32>
    %cst_10 = arith.constant dense<0.000000e+00> : vector<16x2xf32>
    %13 = tpu.matmul %11, %12, %cst_10 {dimension_numbers = #tpu.dot_dimension_numbers<[1], [0], [0], [1], [0, 0, 1, 1], [], []>} : vector<16x32xf32>, vector<32x2xf32>, vector<16x2xf32> -> vector<16x2xf32>
    %c0_11 = arith.constant 0 : index
    %14 = memref.load %arg5[%c0_11] : memref<1xf32, #tpu.memory_space<smem>>
    %15 = vector.extract_strided_slice %13 {offsets = [0, 0], sizes = [8, 2], strides = [1, 1]} : vector<16x2xf32> to vector<8x2xf32>
    %16 = tpu.transpose %15, [1, 0] : vector<8x2xf32> -> vector<2x8xf32>
    %17 = vector.extract_strided_slice %16 {offsets = [0, 0], sizes = [1, 8], strides = [1, 1]} : vector<2x8xf32> to vector<1x8xf32>
    %18 = vector.extract_strided_slice %15 {offsets = [0, 1], sizes = [8, 1], strides = [1, 1]} : vector<8x2xf32> to vector<8x1xf32>
    %19 = vector.broadcast %14 : f32 to vector<1x8xf32>
    %20 = arith.addf %17, %19 : vector<1x8xf32>
    %21 = vector.broadcast %18 : vector<8x1xf32> to vector<8x8xf32>
    %22 = vector.broadcast %20 : vector<1x8xf32> to vector<8x8xf32>
    %23 = arith.addf %21, %22 : vector<8x8xf32>
    %c0_12 = arith.constant 0 : index
    %c0_13 = arith.constant 0 : index
    %c0_14 = arith.constant 0 : index
    %24 = vector.load %arg6[%c0_12, %c0_13, %c0_14] : memref<2x8x8xf32, #tpu.memory_space<vmem>>, vector<1x8x8xf32>
    %25 = vector.shape_cast %24 : vector<1x8x8xf32> to vector<8x8xf32>
    %26 = vector.shape_cast %23 : vector<8x8xf32> to vector<1x8x8xf32>
    tpu.vector_store %arg6[%c0_12, %c0_13, %c0_14], %26 {strides = array<i32>} : memref<2x8x8xf32, #tpu.memory_space<vmem>>, vector<1x8x8xf32>,
    %27 = vector.extract_strided_slice %13 {offsets = [8, 0], sizes = [8, 2], strides = [1, 1]} : vector<16x2xf32> to vector<8x2xf32>
    %28 = tpu.transpose %27, [1, 0] : vector<8x2xf32> -> vector<2x8xf32>
    %29 = vector.extract_strided_slice %28 {offsets = [0, 0], sizes = [1, 8], strides = [1, 1]} : vector<2x8xf32> to vector<1x8xf32>
    %30 = vector.extract_strided_slice %27 {offsets = [0, 1], sizes = [8, 1], strides = [1, 1]} : vector<8x2xf32> to vector<8x1xf32>
    %31 = vector.broadcast %14 : f32 to vector<1x8xf32>
    %32 = arith.addf %29, %31 : vector<1x8xf32>
    %33 = vector.broadcast %30 : vector<8x1xf32> to vector<8x8xf32>
    %34 = vector.broadcast %32 : vector<1x8xf32> to vector<8x8xf32>
    %35 = arith.addf %33, %34 : vector<8x8xf32>
    %c1 = arith.constant 1 : index
    %c0_15 = arith.constant 0 : index
    %c0_16 = arith.constant 0 : index
    %36 = vector.load %arg6[%c1, %c0_15, %c0_16] : memref<2x8x8xf32, #tpu.memory_space<vmem>>, vector<1x8x8xf32>
    %37 = vector.shape_cast %36 : vector<1x8x8xf32> to vector<8x8xf32>
    %38 = vector.shape_cast %35 : vector<8x8xf32> to vector<1x8x8xf32>
    tpu.vector_store %arg6[%c1, %c0_15, %c0_16], %38 {strides = array<i32>} : memref<2x8x8xf32, #tpu.memory_space<vmem>>, vector<1x8x8xf32>,
    return
  }
  func.func @transform_0(%arg0: i32) -> (i32, i32, i32) {
    %c0_i32 = arith.constant 0 : i32
    %c0_i32_0 = arith.constant 0 : i32
    %c0_i32_1 = arith.constant 0 : i32
    return %arg0, %c0_i32, %c0_i32_0 : i32, i32, i32
  }
  func.func @transform_1(%arg0: i32) -> (i32, i32) {
    %c0_i32 = arith.constant 0 : i32
    %c0_i32_0 = arith.constant 0 : i32
    %c0_i32_1 = arith.constant 0 : i32
    return %c0_i32, %c0_i32_0 : i32, i32
  }
  func.func @transform_2(%arg0: i32) -> (i32, i32) {
    %c0_i32 = arith.constant 0 : i32
    %c0_i32_0 = arith.constant 0 : i32
    %c0_i32_1 = arith.constant 0 : i32
    return %c0_i32, %c0_i32_0 : i32, i32
  }
  func.func @transform_3(%arg0: i32) -> (i32, i32) {
    %c0_i32 = arith.constant 0 : i32
    %c0_i32_0 = arith.constant 0 : i32
    %c0_i32_1 = arith.constant 0 : i32
    return %c0_i32, %c0_i32_0 : i32, i32
  }
  func.func @transform_4(%arg0: i32) -> i32 {
    %c0_i32 = arith.constant 0 : i32
    %c0_i32_0 = arith.constant 0 : i32
    return %c0_i32 : i32
  }
  func.func @transform_5(%arg0: i32) -> (i32, i32, i32) {
    %c0_i32 = arith.constant 0 : i32
    %c0_i32_0 = arith.constant 0 : i32
    %c0_i32_1 = arith.constant 0 : i32
    return %arg0, %c0_i32, %c0_i32_0 : i32, i32, i32
  }
}

</mosaic_0001>

<llo_original>
// kernel: tpu_custom_call.1
$region0: #{tpu_custom_call.1}
  #allocation0 [shape = 'u32[]', space=smem, size = 0x4, offset = 0x4, fixed_abs, tag = 'smem constant byte address 0x4 - core index']
  #allocation1 [shape = 'u32[144,128]{1,0:T(1,128)}', space=vmem, size = 0x12000, scoped, tag = 'internal scratch']
  #allocation2 [shape = 'f32[1]{0:T(128)S(6)}', space=smem, size = 0x200, scoped, tag = 'scoped memory for tpu_custom_call.1']
  %s0 = inlined_call_operand.hbm [shape: f32[2,8,32], index: 0, kind: input, shape index: {}]
  %s1 = inlined_call_operand.vmem [shape: f32[32,32], index: 1, kind: input, shape index: {}]
  %s2 = inlined_call_operand.vmem [shape: f32[1,32], index: 2, kind: input, shape index: {}]
  %s3 = inlined_call_operand.vmem [shape: f32[32,2], index: 3, kind: input, shape index: {}]
  %s4 = inlined_call_operand.<no memory space> [shape: f32[1], index: 4, kind: input, shape index: {}]
  %s5 = inlined_call_operand.hbm [shape: f32[2,8,8], index: 5, kind: output, shape index: {}]
  %s6 = sld [smem:[#allocation0]]
  $region34: #{tpu_custom_call.1} parent=0
    _
  %s8 = ssub.s32 1, %s6
  %s9 = scalar_select 0, %s8, %s6
  %10 = sst [smem:[#allocation2]] %s4
  $region1: #{tpu_custom_call.1} parent=0
    #allocation3 [shape = 'u8[8192]{0}', space=vmem, size = 0x2000, scoped, tag = 'input window, operand 0, single buffered']
    #allocation4 [shape = 's32[1]{0}', space=sflag, size = 0x4, scoped, tag = 'scoped memory for tpu_custom_call.1']
    #allocation5 [shape = 's32[1]{0}', space=sflag, size = 0x4, scoped, tag = 'scoped memory for tpu_custom_call.1']
    #allocation6 [shape = 'u8[8192]{0}', space=vmem, size = 0x2000, scoped, tag = 'output window, operand 0, single buffered']
    %11 = vsyncpa [#allocation4], 0
    %12 = vsyncpa [#allocation5], 0
    // Predicated region
    $region2: #{tpu_custom_call.1} parent=1 // pred_check
      _
    $region3: #{tpu_custom_call.1} parent=1 // pred_check_branch
      %14 = sbr.rel (0) target = $region5
    $region4: #{tpu_custom_call.1} parent=1 // pred_region
      %s16 = ssub.s32 256, 256
      %17 = vsyncadd [#allocation4], %s16
      %s18 = sshll.u32 [#allocation3], 4
      %s19 = int_to_ptr.vmem [resolvable:$true] %s18
      %24 = dma.hbm_to_vmem [thread:$0]  %s0, 256, %s19, [#allocation4], 128, 128, 8
    $region5: #{tpu_custom_call.1} parent=1 // pred_fallthru
      _
    // Predicated region
    $region6: #{tpu_custom_call.1} parent=1 // pred_check
      _
    $region7: #{tpu_custom_call.1} parent=1 // pred_check_branch
      %26 = sbr.rel (0) target = $region9
    $region8: #{tpu_custom_call.1} parent=1 // pred_region
      _
    $region9: #{tpu_custom_call.1} parent=1 // pred_fallthru
      _
    // Predicated region
    $region10: #{tpu_custom_call.1} parent=1 // pred_check
      _
    $region11: #{tpu_custom_call.1} parent=1 // pred_check_branch
      %28 = sbr.rel (0) target = $region13
    $region12: #{tpu_custom_call.1} parent=1 // pred_region
      _
    $region13: #{tpu_custom_call.1} parent=1 // pred_fallthru
      _
    // Predicated region
    $region14: #{tpu_custom_call.1} parent=1 // pred_check
      _
    $region15: #{tpu_custom_call.1} parent=1 // pred_check_branch
      %30 = sbr.rel (0) target = $region17
    $region16: #{tpu_custom_call.1} parent=1 // pred_region
      _
    $region17: #{tpu_custom_call.1} parent=1 // pred_fallthru
      _
    // Predicated region
    $region18: #{tpu_custom_call.1} parent=1 // pred_check
      _
    $region19: #{tpu_custom_call.1} parent=1 // pred_check_branch
      %32 = sbr.rel (0) target = $region21
    $region20: #{tpu_custom_call.1} parent=1 // pred_region
      _
    $region21: #{tpu_custom_call.1} parent=1 // pred_fallthru
      _
    // Predicated region
    $region22: #{tpu_custom_call.1} parent=1 // pred_check
      _
    $region23: #{tpu_custom_call.1} parent=1 // pred_check_branch
      %34 = sbr.rel (0) target = $region25
    $region24: #{tpu_custom_call.1} parent=1 // pred_region
      %35 = dma.done [#allocation4], 256
    $region25: #{tpu_custom_call.1} parent=1 // pred_fallthru
      _
    %v36 = vld [vmem:[#allocation3] sm:$0xff]
    %v37 = vld [vmem:[#allocation3 + $0x8] sm:$0xff]
    %v38 = vld [vmem:[%s1] sm:$0xff]
    %v39 = vld [vmem:[%s1 + $0x8] sm:$0xff]
    %v40 = vld [vmem:[%s1 + $0x10] sm:$0xff]
    %v41 = vld [vmem:[%s1 + $0x18] sm:$0xff]
    %v42 = vld [vmem:[%s2] sm:$0x1]
    %v44 = vlaneseq
    %v45 = vshrl.u32 %v44, 7
    %v46 = vsub.s32 0, %v45
    %v47 = vrot.slane %v42, %v46
    %vm49 = vcmask 261120
    %v51 = vsel %vm49, %v36, 0
    %v54 = vsel %vm49, %v37, 0
    %56 = vmatprep.subr.mxu0 0.0
    %57 = vmatpush1.msra.mxu0 %v38
    %58 = vmatprep.subr.mxu0 0.0
    %59 = vmatpush1.msra.mxu0 %v39
    %60 = vmatprep.subr.mxu0 0.0
    %61 = vmatpush1.msra.mxu0 %v40
    %62 = vmatprep.subr.mxu0 0.0
    %63 = vmatpush1.msra.mxu0 %v41
    %64 = vmatprep.subr.mxu0 0.0
    %65 = vmatpush1.msra.mxu0 0.0
    %66 = vmatprep.subr.mxu0 0.0
    %67 = vmatpush1.msra.mxu0 0.0
    %68 = vmatprep.subr.mxu0 0.0
    %69 = vmatpush1.msra.mxu0 0.0
    %70 = vmatprep.subr.mxu0 0.0
    %71 = vmatpush1.msra.mxu0 0.0
    %72 = vmatprep.subr.mxu0 0.0
    %73 = vmatpush1.msra.mxu0 0.0
    %74 = vmatprep.subr.mxu0 0.0
    %75 = vmatpush1.msra.mxu0 0.0
    %76 = vmatprep.subr.mxu0 0.0
    %77 = vmatpush1.msra.mxu0 0.0
    %78 = vmatprep.subr.mxu0 0.0
    %79 = vmatpush1.msra.mxu0 0.0
    %80 = vmatprep.subr.mxu0 0.0
    %81 = vmatpush1.msra.mxu0 0.0
    %82 = vmatprep.subr.mxu0 0.0
    %83 = vmatpush1.msra.mxu0 0.0
    %84 = vmatprep.subr.mxu0 0.0
    %85 = vmatpush1.msra.mxu0 0.0
    %86 = vmatprep.subr.mxu0 0.0
    %87 = vmatpush1.msra.mxu0 0.0
    %88 = vmatprep.subr.mxu0 0.0
    %89 = vmatpush1.msra.mxu0 0.0
    %90 = vmatprep.subr.mxu0 0.0
    %91 = vmatpush1.msra.mxu0 0.0
    %92 = vmatprep.subr.mxu0 0.0
    %93 = vmatpush1.msra.mxu0 0.0
    %94 = vmatprep.subr.mxu0 0.0
    %95 = vmatpush1.msra.mxu0 0.0
    %96 = vmatprep.subr.mxu0 0.0
    %97 = vmatpush1.msra.mxu0 0.0
    %98 = vmatprep.subr.mxu0 0.0
    %99 = vmatpush1.msra.mxu0 0.0
    %100 = vmatprep.subr.mxu0 0.0
    %101 = vmatpush1.msra.mxu0 0.0
    %102 = vmatprep.subr.mxu0 0.0
    %103 = vmatpush1.msra.mxu0 0.0
    %104 = vmatprep.subr.mxu0 0.0
    %105 = vmatpush1.msra.mxu0 0.0
    %106 = vmatprep.subr.mxu0 0.0
    %107 = vmatpush1.msra.mxu0 0.0
    %108 = vmatprep.subr.mxu0 0.0
    %109 = vmatpush1.msra.mxu0 0.0
    %110 = vmatprep.subr.mxu0 0.0
    %111 = vmatpush1.msra.mxu0 0.0
    %112 = vmatprep.subr.mxu0 0.0
    %113 = vmatpush1.msra.mxu0 0.0
    %114 = vmatprep.subr.mxu0 0.0
    %115 = vmatpush1.msra.mxu0 0.0
    %116 = vmatprep.subr.mxu0 0.0
    %117 = vmatpush1.msra.mxu0 0.0
    %118 = vmatprep.subr.mxu0 0.0
    %119 = vmatpush1.msra.mxu0 0.0
    %120 = vmatprep.mubr.f32.mxu0 0.0
    %121 = vmatmul.mubr.f32.gmra.mrb[0].mxu0 %v51
    %v122 = vpop.f32.mrb[0].mxu0
    %v123 = vadd.f32 %v47, %v122
    %v124 = vpop.f32.mrb[0].mxu0
    %125 = vmatprep.mubr.f32.mxu0 0.0
    %126 = vmatmul.mubr.f32.gmra.mrb[0].mxu0 %v54
    %v127 = vpop.f32.mrb[0].mxu0
    %v128 = vadd.f32 %v47, %v127
    %v129 = vpop.f32.mrb[0].mxu0
    %130 = vdwg.mxu0
    %vm131 = vcmp.ge.f32.partialorder %v123, 0.0
    %vm132 = vcmp.ge.f32.partialorder %v128, 0.0
    %v133 = vmul.f32 %v123, 0.2
    %v134 = vmul.f32 %v128, 0.2
    %v135 = vsel %vm131, %v123, %v133
    %v136 = vsel %vm132, %v128, %v134
    %v137 = vld [vmem:[%s3] sm:$0xff]
    %v138 = vld [vmem:[%s3 + $0x8] sm:$0xff]
    %v139 = vld [vmem:[%s3 + $0x10] sm:$0xff]
    %v140 = vld [vmem:[%s3 + $0x18] sm:$0xff]
    %v142 = vsel %vm49, %v135, 0
    %v145 = vsel %vm49, %v136, 0
    %147 = vmatprep.subr.mxu0 0.0
    %148 = vmatpush1.msra.mxu0 %v137
    %149 = vmatprep.subr.mxu0 0.0
    %150 = vmatpush1.msra.mxu0 %v138
    %151 = vmatprep.subr.mxu0 0.0
    %152 = vmatpush1.msra.mxu0 %v139
    %153 = vmatprep.subr.mxu0 0.0
    %154 = vmatpush1.msra.mxu0 %v140
    %155 = vmatprep.subr.mxu0 0.0
    %156 = vmatpush1.msra.mxu0 0.0
    %157 = vmatprep.subr.mxu0 0.0
    %158 = vmatpush1.msra.mxu0 0.0
    %159 = vmatprep.subr.mxu0 0.0
    %160 = vmatpush1.msra.mxu0 0.0
    %161 = vmatprep.subr.mxu0 0.0
    %162 = vmatpush1.msra.mxu0 0.0
    %163 = vmatprep.subr.mxu0 0.0
    %164 = vmatpush1.msra.mxu0 0.0
    %165 = vmatprep.subr.mxu0 0.0
    %166 = vmatpush1.msra.mxu0 0.0
    %167 = vmatprep.subr.mxu0 0.0
    %168 = vmatpush1.msra.mxu0 0.0
    %169 = vmatprep.subr.mxu0 0.0
    %170 = vmatpush1.msra.mxu0 0.0
    %171 = vmatprep.subr.mxu0 0.0
    %172 = vmatpush1.msra.mxu0 0.0
    %173 = vmatprep.subr.mxu0 0.0
    %174 = vmatpush1.msra.mxu0 0.0
    %175 = vmatprep.subr.mxu0 0.0
    %176 = vmatpush1.msra.mxu0 0.0
    %177 = vmatprep.subr.mxu0 0.0
    %178 = vmatpush1.msra.mxu0 0.0
    %179 = vmatprep.subr.mxu0 0.0
    %180 = vmatpush1.msra.mxu0 0.0
    %181 = vmatprep.subr.mxu0 0.0
    %182 = vmatpush1.msra.mxu0 0.0
    %183 = vmatprep.subr.mxu0 0.0
    %184 = vmatpush1.msra.mxu0 0.0
    %185 = vmatprep.subr.mxu0 0.0
    %186 = vmatpush1.msra.mxu0 0.0
    %187 = vmatprep.subr.mxu0 0.0
    %188 = vmatpush1.msra.mxu0 0.0
    %189 = vmatprep.subr.mxu0 0.0
    %190 = vmatpush1.msra.mxu0 0.0
    %191 = vmatprep.subr.mxu0 0.0
    %192 = vmatpush1.msra.mxu0 0.0
    %193 = vmatprep.subr.mxu0 0.0
    %194 = vmatpush1.msra.mxu0 0.0
    %195 = vmatprep.subr.mxu0 0.0
    %196 = vmatpush1.msra.mxu0 0.0
    %197 = vmatprep.subr.mxu0 0.0
    %198 = vmatpush1.msra.mxu0 0.0
    %199 = vmatprep.subr.mxu0 0.0
    %200 = vmatpush1.msra.mxu0 0.0
    %201 = vmatprep.subr.mxu0 0.0
    %202 = vmatpush1.msra.mxu0 0.0
    %203 = vmatprep.subr.mxu0 0.0
    %204 = vmatpush1.msra.mxu0 0.0
    %205 = vmatprep.subr.mxu0 0.0
    %206 = vmatpush1.msra.mxu0 0.0
    %207 = vmatprep.subr.mxu0 0.0
    %208 = vmatpush1.msra.mxu0 0.0
    %209 = vmatprep.subr.mxu0 0.0
    %210 = vmatpush1.msra.mxu0 0.0
    %211 = vmatprep.mubr.f32.mxu0 0.0
    %212 = vmatmul.mubr.f32.gmra.mrb[0].mxu0 %v142
    %v213 = vpop.f32.mrb[0].mxu0
    %v214 = vadd.f32 0.0, %v213
    %v215 = vpop.f32.mrb[0].mxu0
    %216 = vmatprep.mubr.f32.mxu0 0.0
    %217 = vmatmul.mubr.f32.gmra.mrb[0].mxu0 %v145
    %v218 = vpop.f32.mrb[0].mxu0
    %v219 = vadd.f32 0.0, %v218
    %v220 = vpop.f32.mrb[0].mxu0
    %221 = vdwg.mxu0
    %s222 = sld [smem:[#allocation2]]
    %223 = vxpose.xlu0.b32.start [1/16] %v214, 128
    %224 = vxpose.xlu0.b32.cont [2/16] 0.0, 128
    %225 = vxpose.xlu0.b32.cont [3/16] 0.0, 128
    %226 = vxpose.xlu0.b32.cont [4/16] 0.0, 128
    %227 = vxpose.xlu0.b32.cont [5/16] 0.0, 128
    %228 = vxpose.xlu0.b32.cont [6/16] 0.0, 128
    %229 = vxpose.xlu0.b32.cont [7/16] 0.0, 128
    %230 = vxpose.xlu0.b32.cont [8/16] 0.0, 128
    %231 = vxpose.xlu0.b32.cont [9/16] 0.0, 128
    %232 = vxpose.xlu0.b32.cont [10/16] 0.0, 128
    %233 = vxpose.xlu0.b32.cont [11/16] 0.0, 128
    %234 = vxpose.xlu0.b32.cont [12/16] 0.0, 128
    %235 = vxpose.xlu0.b32.cont [13/16] 0.0, 128
    %236 = vxpose.xlu0.b32.cont [14/16] 0.0, 128
    %237 = vxpose.xlu0.b32.cont [15/16] 0.0, 128
    %238 = vxpose.xlu0.b32.end [16/16] 0.0, 128
    %v239 = vpop.trf.xlu0
    %v240 = vpop.trf.xlu0
    %v241 = vpop.trf.xlu0
    %v242 = vpop.trf.xlu0
    %v243 = vpop.trf.xlu0
    %v244 = vpop.trf.xlu0
    %v245 = vpop.trf.xlu0
    %v246 = vpop.trf.xlu0
    %v247 = vpop.trf.xlu0
    %v248 = vpop.trf.xlu0
    %v249 = vpop.trf.xlu0
    %v250 = vpop.trf.xlu0
    %v251 = vpop.trf.xlu0
    %v252 = vpop.trf.xlu0
    %v253 = vpop.trf.xlu0
    %v254 = vpop.trf.xlu0
    %v255 = vstv %s222
    %v256 = vadd.f32 %v239, %v255
    %258 = vset.pattern.permute.xlu0 1
    %259 = vperm.xlu0 %258, %v214
    %v260 = vpop.permute.xlu0 %259
    %v262 = vlaneseq
    %v263 = vshrl.u32 %v262, 7
    %v264 = vsub.s32 0, %v263
    %v265 = vrot.slane %v256, %v264
    %v266 = vadd.f32 %v260, %v265
    %vm267 = vcmask 64512
    %268 = vst.msk [vmem:[#allocation6] sm:$0xff] %vm267, %v266
    %269 = vxpose.xlu0.b32.start [1/16] %v219, 128
    %270 = vxpose.xlu0.b32.cont [2/16] 0.0, 128
    %271 = vxpose.xlu0.b32.cont [3/16] 0.0, 128
    %272 = vxpose.xlu0.b32.cont [4/16] 0.0, 128
    %273 = vxpose.xlu0.b32.cont [5/16] 0.0, 128
    %274 = vxpose.xlu0.b32.cont [6/16] 0.0, 128
    %275 = vxpose.xlu0.b32.cont [7/16] 0.0, 128
    %276 = vxpose.xlu0.b32.cont [8/16] 0.0, 128
    %277 = vxpose.xlu0.b32.cont [9/16] 0.0, 128
    %278 = vxpose.xlu0.b32.cont [10/16] 0.0, 128
    %279 = vxpose.xlu0.b32.cont [11/16] 0.0, 128
    %280 = vxpose.xlu0.b32.cont [12/16] 0.0, 128
    %281 = vxpose.xlu0.b32.cont [13/16] 0.0, 128
    %282 = vxpose.xlu0.b32.cont [14/16] 0.0, 128
    %283 = vxpose.xlu0.b32.cont [15/16] 0.0, 128
    %284 = vxpose.xlu0.b32.end [16/16] 0.0, 128
    %v285 = vpop.trf.xlu0
    %v286 = vpop.trf.xlu0
    %v287 = vpop.trf.xlu0
    %v288 = vpop.trf.xlu0
    %v289 = vpop.trf.xlu0
    %v290 = vpop.trf.xlu0
    %v291 = vpop.trf.xlu0
    %v292 = vpop.trf.xlu0
    %v293 = vpop.trf.xlu0
    %v294 = vpop.trf.xlu0
    %v295 = vpop.trf.xlu0
    %v296 = vpop.trf.xlu0
    %v297 = vpop.trf.xlu0
    %v298 = vpop.trf.xlu0
    %v299 = vpop.trf.xlu0
    %v300 = vpop.trf.xlu0
    %v301 = vadd.f32 %v285, %v255
    %303 = vset.pattern.permute.xlu0 1
    %304 = vperm.xlu0 %303, %v219
    %v305 = vpop.permute.xlu0 %304
    %v307 = vlaneseq
    %v308 = vshrl.u32 %v307, 7
    %v309 = vsub.s32 0, %v308
    %v310 = vrot.slane %v301, %v309
    %v311 = vadd.f32 %v305, %v310
    %s312 = scalar_lea.vmem [#allocation6], 8
    %313 = vst.msk [vmem:[%s312] sm:$0xff] %vm267, %v311
    // Predicated region
    $region26: #{tpu_custom_call.1} parent=1 // pred_check
      _
    $region27: #{tpu_custom_call.1} parent=1 // pred_check_branch
      %315 = sbr.rel (0) target = $region29
    $region28: #{tpu_custom_call.1} parent=1 // pred_region
      %s317 = ssub.s32 256, 256
      %318 = vsyncadd [#allocation5], %s317
      %s319 = sshll.u32 [#allocation6], 4
      %s320 = int_to_ptr.vmem [resolvable:$true] %s319
      %325 = dma.vmem_to_hbm [thread:$0]  %s320, 256, %s5, [#allocation5], 128, 128, 8
    $region29: #{tpu_custom_call.1} parent=1 // pred_fallthru
      _
    // Predicated region
    $region30: #{tpu_custom_call.1} parent=1 // pred_check
      _
    $region31: #{tpu_custom_call.1} parent=1 // pred_check_branch
      %327 = sbr.rel (0) target = $region33
    $region32: #{tpu_custom_call.1} parent=1 // pred_region
      %328 = dma.done [#allocation5], 256
    $region33: #{tpu_custom_call.1} parent=1 // pred_fallthru
      _
    %329 = vsyncpa [#allocation4], 1
    %330 = vsyncpa [#allocation5], 1

</llo_original>
